<compile_context>
chip_gen: v6e
topology: v6e:2x2x1
jax: 0.10.0
libtpu: 0.0.40
codegen_flags: <defaults>
</compile_context>

<pallas_src>
import functools

import jax
import jax.numpy as jnp
from jax import lax
from jax.experimental import pallas as pl
from jax.experimental.pallas import tpu as pltpu


def _round_up(x, m):
    return (x + m - 1) // m * m


def _hqt_lora_kernel(x_ref, w_ref, a_ref, b_ref, o_ref, acc_ref, ax_ref, *, tk):
    # x_ref:   (tm, tk)       activation tile
    # w_ref:   (tn, tk)       base weight tile, (N, K) layout (no transpose)
    # a_ref:   (R_pad, K_pad) full lora_A, resident in VMEM (tiny)
    # b_ref:   (tn, R_pad)    lora_B tile with `scaling` pre-folded, (N, R) layout
    # o_ref:   (tm, tn)       output tile (revisited across k, written at last k)
    # acc_ref: (tm, tn)   f32 base+lora accumulator (scratch)
    # ax_ref:  (tm, R_pad) f32 x @ A^T accumulator (scratch, reused across j)
    j = pl.program_id(1)
    k = pl.program_id(2)
    nk = pl.num_programs(2)

    @pl.when(k == 0)
    def _():
        acc_ref[...] = jnp.zeros_like(acc_ref)

    @pl.when((j == 0) & (k == 0))
    def _():
        ax_ref[...] = jnp.zeros_like(ax_ref)

    x = x_ref[...]

    # Base path: x_tile @ W_tile^T (contract K = dim 1 of both operands).
    acc_ref[...] += lax.dot_general(
        x, w_ref[...], (((1,), (1,)), ((), ())),
        preferred_element_type=jnp.float32)

    # LoRA stage 1: accumulate AX = x @ A^T over k, computed once per M tile
    # (only on the j == 0 pass; the scratch persists and is reused for j > 0).
    @pl.when(j == 0)
    def _():
        koff = pl.multiple_of(k * tk, tk)
        a_blk = a_ref[:, pl.ds(koff, tk)]            # (R_pad, tk)
        ax_ref[...] += lax.dot_general(
            x, a_blk, (((1,), (1,)), ((), ())),
            preferred_element_type=jnp.float32)

    # Finalize: add LoRA contribution (AX @ (scaling*B)^T) and store the tile.
    @pl.when(k == nk - 1)
    def _():
        lora = lax.dot_general(
            ax_ref[...].astype(b_ref.dtype), b_ref[...],
            (((1,), (1,)), ((), ())),
            preferred_element_type=jnp.float32)
        o_ref[...] = (acc_ref[...] + lora).astype(o_ref.dtype)


def hqt_lora_linear(x, weight, lora_A, lora_B, scaling, *,
                    tm=256, tn=256, tk=512):
    """Fused base-linear + LoRA forward: x @ W^T + (x @ A^T) @ B^T * scaling.

    x:       (..., in_features)
    weight:  (out_features, in_features)   -- kept in (N, K) layout, no transpose
    lora_A:  (r, in_features)
    lora_B:  (out_features, r)
    """
    K = x.shape[-1]
    N = weight.shape[0]
    r = lora_A.shape[0]
    lead = x.shape[:-1]

    x2d = x.reshape(-1, K)
    M = x2d.shape[0]

    # Clamp tiles to the (padded) problem; keep sublane/lane alignment.
    tm = min(tm, _round_up(M, 8))
    tn = min(tn, _round_up(N, 128))
    tk = min(tk, _round_up(K, 128))
    Mp, Np, Kp = _round_up(M, tm), _round_up(N, tn), _round_up(K, tk)
    Rp = _round_up(max(r, 1), 128)        # pad rank to a full lane width

    # Fold `scaling` into lora_B once (tiny (N, r) multiply) so the epilogue
    # avoids a (tm, tn) VPU multiply per output tile.
    b_scaled = lora_B * jnp.asarray(scaling, dtype=lora_B.dtype)

    # Zero-pad to tile multiples. No-op when dims already divide; in production
    # the weights would be pre-padded once at parameter-load time.
    if (Mp, Kp) != (M, K):
        x2d = jnp.pad(x2d, ((0, Mp - M), (0, Kp - K)))
    wp = weight if (Np, Kp) == weight.shape else jnp.pad(
        weight, ((0, Np - N), (0, Kp - K)))
    ap = lora_A if (Rp, Kp) == lora_A.shape else jnp.pad(
        lora_A, ((0, Rp - r), (0, Kp - K)))
    bp = b_scaled if (Np, Rp) == b_scaled.shape else jnp.pad(
        b_scaled, ((0, Np - N), (0, Rp - r)))

    grid = (Mp // tm, Np // tn, Kp // tk)

    cost = pl.CostEstimate(
        flops=2 * M * N * K + 2 * M * K * r + 2 * M * r * N,
        transcendentals=0,
        bytes_accessed=(x.size * x.dtype.itemsize
                        + weight.size * weight.dtype.itemsize
                        + lora_A.size * lora_A.dtype.itemsize
                        + lora_B.size * lora_B.dtype.itemsize
                        + M * N * x.dtype.itemsize))

    out = pl.pallas_call(
        functools.partial(_hqt_lora_kernel, tk=tk),
        out_shape=jax.ShapeDtypeStruct((Mp, Np), x.dtype),
        grid_spec=pltpu.PrefetchScalarGridSpec(
            num_scalar_prefetch=0,
            grid=grid,
            in_specs=[
                pl.BlockSpec((tm, tk), lambda i, j, k: (i, k)),   # x
                pl.BlockSpec((tn, tk), lambda i, j, k: (j, k)),   # W (N, K)
                pl.BlockSpec((Rp, Kp), lambda i, j, k: (0, 0)),   # A, VMEM-resident
                pl.BlockSpec((tn, Rp), lambda i, j, k: (j, 0)),   # scaling * B
            ],
            out_specs=pl.BlockSpec((tm, tn), lambda i, j, k: (i, j)),
            scratch_shapes=[
                pltpu.VMEM((tm, tn), jnp.float32),   # base/lora accumulator
                pltpu.VMEM((tm, Rp), jnp.float32),   # x @ A^T accumulator
            ]),
        # M axis may shard across TensorCores; j/k must stay "arbitrary"
        # (k is the reduction; the AX scratch is reused across j on one core).
        compiler_params=pltpu.CompilerParams(
            dimension_semantics=("parallel", "arbitrary", "arbitrary"),
            vmem_limit_bytes=64 * 1024 * 1024),
        cost_estimate=cost,
    )(x2d, wp, ap, bp)

    return out[:M, :N].reshape(*lead, N)


if __name__ == "__main__":
    def ref_forward(x, weight, lora_A, lora_B, scaling):
        hp = jax.lax.Precision.HIGHEST
        xf = x.astype(jnp.float32).reshape(-1, x.shape[-1])
        wf, af, bf = (t.astype(jnp.float32) for t in (weight, lora_A, lora_B))
        base = jnp.dot(xf, wf.T, precision=hp)
        lora = jnp.dot(jnp.dot(xf, af.T, precision=hp), bf.T, precision=hp)
        out = base + lora * scaling
        return out.astype(x.dtype).reshape(*x.shape[:-1], weight.shape[0])

    key = jax.random.PRNGKey(0)

    # --- Test 1: small, module-consistent shapes (single-tile grid). ---
    batch, seq, in_features, out_features = 2, 8, 32, 64
    r, lora_alpha = 4, 8
    scaling = lora_alpha / r          # use_rslora=False default
    kx, kw, ka, kb, key = jax.random.split(key, 5)
    x = jax.random.normal(kx, (batch, seq, in_features), dtype=jnp.float32)
    weight = jax.random.normal(kw, (out_features, in_features), jnp.float32) * 0.1
    # NOTE: PEFT default init sets lora_B = 0; use nonzero values here so the
    # LoRA path is actually exercised.
    lora_A = jax.random.normal(ka, (r, in_features), jnp.float32) * 0.1
    lora_B = jax.random.normal(kb, (out_features, r), jnp.float32) * 0.1

    out = jax.block_until_ready(
        hqt_lora_linear(x, weight, lora_A, lora_B, scaling))
    ref = ref_forward(x, weight, lora_A, lora_B, scaling)
    assert out.shape == (batch, seq, out_features)
    assert jnp.allclose(out, ref, atol=1e-4, rtol=1e-4), \
        float(jnp.max(jnp.abs(out - ref)))

    # --- Test 2: multi-tile grid with padding on M, N and K (exercises the
    # K reduction accumulator and AX reuse across N tiles). Small explicit
    # tiles keep it fast while forcing grid = (3, 2, 2). ---
    batch2, seq2, in2, out2 = 2, 23, 200, 136
    r2, alpha2 = 4, 16
    scaling2 = alpha2 / r2
    kx, kw, ka, kb, key = jax.random.split(key, 5)
    x2 = jax.random.normal(kx, (batch2, seq2, in2), jnp.float32)
    w2 = jax.random.normal(kw, (out2, in2), jnp.float32) * 0.05
    a2 = jax.random.normal(ka, (r2, in2), jnp.float32) * 0.05
    b2 = jax.random.normal(kb, (out2, r2), jnp.float32) * 0.05

    out2_ = jax.block_until_ready(
        hqt_lora_linear(x2, w2, a2, b2, scaling2, tm=16, tn=128, tk=128))
    ref2 = ref_forward(x2, w2, a2, b2, scaling2)
    assert out2_.shape == (batch2, seq2, out2)
    assert jnp.allclose(out2_, ref2, atol=2e-3, rtol=2e-3), \
        float(jnp.max(jnp.abs(out2_ - ref2)))

    # --- Test 3: bf16 inputs, multi-tile (exercises f32 accumulation + cast
    # on the store path, the typical production dtype). ---
    batch3, seq3, in3, out3 = 2, 16, 256, 384
    r3, alpha3 = 8, 16
    scaling3 = alpha3 / r3
    kx, kw, ka, kb, key = jax.random.split(key, 5)
    x3 = jax.random.normal(kx, (batch3, seq3, in3), jnp.float32).astype(jnp.bfloat16)
    w3 = (jax.random.normal(kw, (out3, in3), jnp.float32) * 0.1).astype(jnp.bfloat16)
    a3 = (jax.random.normal(ka, (r3, in3), jnp.float32) * 0.1).astype(jnp.bfloat16)
    b3 = (jax.random.normal(kb, (out3, r3), jnp.float32) * 0.1).astype(jnp.bfloat16)

    out3_ = jax.block_until_ready(
        hqt_lora_linear(x3, w3, a3, b3, scaling3, tm=32, tn=128, tk=128))
    ref3 = ref_forward(x3, w3, a3, b3, scaling3)
    assert out3_.shape == (batch3, seq3, out3)
    assert jnp.allclose(out3_.astype(jnp.float32), ref3.astype(jnp.float32),
                        atol=0.1, rtol=0.1), \
        float(jnp.max(jnp.abs(out3_.astype(jnp.float32) - ref3.astype(jnp.float32))))

    print("KERNEL_OK")
</pallas_src>

<mosaic_0001>
module attributes {stable_mosaic.version = 11 : i64} {
  func.func @_hqt_lora_kernel(%arg0: i32, %arg1: i32, %arg2: i32, %arg3: memref<16x128xf32, #tpu.memory_space<vmem>>, %arg4: memref<128x128xf32, #tpu.memory_space<vmem>>, %arg5: memref<128x128xf32, #tpu.memory_space<vmem>>, %arg6: memref<128x128xf32, #tpu.memory_space<vmem>>, %arg7: memref<16x128xf32, #tpu.memory_space<vmem>>, %arg8: memref<16x128xf32, #tpu.memory_space<vmem>>, %arg9: memref<16x128xf32, #tpu.memory_space<vmem>>) attributes {dimension_semantics = [#tpu.dimension_semantics<parallel>, #tpu.dimension_semantics<arbitrary>, #tpu.dimension_semantics<arbitrary>], iteration_bounds = array<i64: 1, 1, 1>, scalar_prefetch = 0 : i64, scratch_operands = 2 : i64, tpu.core_type = #tpu.core_type<tc>, window_params = [{transform_indices = @transform_0, window_bounds = array<i64: 16, 128>}, {transform_indices = @transform_1, window_bounds = array<i64: 128, 128>}, {pipeline_mode = #tpu.pipeline_mode<synchronous>, transform_indices = @transform_2, window_bounds = array<i64: 128, 128>}, {transform_indices = @transform_3, window_bounds = array<i64: 128, 128>}, {transform_indices = @transform_4, window_bounds = array<i64: 16, 128>}]} {
    %c0_i32 = arith.constant 0 : i32
    %0 = arith.cmpi eq, %arg2, %c0_i32 : i32
    %1 = arith.extui %0 : i1 to i32
    %c0_i32_0 = arith.constant 0 : i32
    %2 = arith.cmpi ne, %1, %c0_i32_0 : i32
    scf.if %2 {
      %cst_15 = arith.constant 0.000000e+00 : f32
      %20 = vector.broadcast %cst_15 : f32 to vector<16x128xf32>
      %c0_16 = arith.constant 0 : index
      %c0_17 = arith.constant 0 : index
      %21 = vector.load %arg8[%c0_16, %c0_17] : memref<16x128xf32, #tpu.memory_space<vmem>>, vector<16x128xf32>
      tpu.vector_store %arg8[%c0_16, %c0_17], %20 {strides = array<i32>} : memref<16x128xf32, #tpu.memory_space<vmem>>, vector<16x128xf32>,
    } else {
    }
    %c0_i32_1 = arith.constant 0 : i32
    %3 = arith.cmpi eq, %arg1, %c0_i32_1 : i32
    %c0_i32_2 = arith.constant 0 : i32
    %4 = arith.cmpi eq, %arg2, %c0_i32_2 : i32
    %5 = arith.andi %3, %4 : i1
    %6 = arith.extui %5 : i1 to i32
    %c0_i32_3 = arith.constant 0 : i32
    %7 = arith.cmpi ne, %6, %c0_i32_3 : i32
    scf.if %7 {
      %cst_15 = arith.constant 0.000000e+00 : f32
      %20 = vector.broadcast %cst_15 : f32 to vector<16x128xf32>
      %c0_16 = arith.constant 0 : index
      %c0_17 = arith.constant 0 : index
      %21 = vector.load %arg9[%c0_16, %c0_17] : memref<16x128xf32, #tpu.memory_space<vmem>>, vector<16x128xf32>
      tpu.vector_store %arg9[%c0_16, %c0_17], %20 {strides = array<i32>} : memref<16x128xf32, #tpu.memory_space<vmem>>, vector<16x128xf32>,
    } else {
    }
    %c0 = arith.constant 0 : index
    %c0_4 = arith.constant 0 : index
    %8 = vector.load %arg3[%c0, %c0_4] : memref<16x128xf32, #tpu.memory_space<vmem>>, vector<16x128xf32>
    %c0_5 = arith.constant 0 : index
    %c0_6 = arith.constant 0 : index
    %9 = vector.load %arg8[%c0_5, %c0_6] : memref<16x128xf32, #tpu.memory_space<vmem>>, vector<16x128xf32>
    %c0_7 = arith.constant 0 : index
    %c0_8 = arith.constant 0 : index
    %10 = vector.load %arg4[%c0_7, %c0_8] : memref<128x128xf32, #tpu.memory_space<vmem>>, vector<128x128xf32>
    %cst = arith.constant dense<0.000000e+00> : vector<16x128xf32>
    %11 = tpu.matmul %8, %10, %cst {dimension_numbers = #tpu.dot_dimension_numbers<[1], [1], [0], [0], [0, 0, 1, 0], [], []>} : vector<16x128xf32>, vector<128x128xf32>, vector<16x128xf32> -> vector<16x128xf32>
    %12 = arith.addf %9, %11 : vector<16x128xf32>
    %c0_9 = arith.constant 0 : index
    %c0_10 = arith.constant 0 : index
    %13 = vector.load %arg8[%c0_9, %c0_10] : memref<16x128xf32, #tpu.memory_space<vmem>>, vector<16x128xf32>
    tpu.vector_store %arg8[%c0_9, %c0_10], %12 {strides = array<i32>} : memref<16x128xf32, #tpu.memory_space<vmem>>, vector<16x128xf32>,
    %c0_i32_11 = arith.constant 0 : i32
    %14 = arith.cmpi eq, %arg1, %c0_i32_11 : i32
    %15 = arith.extui %14 : i1 to i32
    %c0_i32_12 = arith.constant 0 : i32
    %16 = arith.cmpi ne, %15, %c0_i32_12 : i32
    scf.if %16 {
      %c128_i32 = arith.constant 128 : i32
      %20 = arith.muli %arg2, %c128_i32 : i32
      %21 = tpu.assume_multiple %20, 128 : i32
      %c0_15 = arith.constant 0 : index
      %22 = arith.index_cast %21 : i32 to index
      %23 = vector.load %arg5[%c0_15, %22] : memref<128x128xf32, #tpu.memory_space<vmem>>, vector<128x128xf32>
      %c0_16 = arith.constant 0 : index
      %c0_17 = arith.constant 0 : index
      %24 = vector.load %arg9[%c0_16, %c0_17] : memref<16x128xf32, #tpu.memory_space<vmem>>, vector<16x128xf32>
      %cst_18 = arith.constant dense<0.000000e+00> : vector<16x128xf32>
      %25 = tpu.matmul %8, %23, %cst_18 {dimension_numbers = #tpu.dot_dimension_numbers<[1], [1], [0], [0], [0, 0, 1, 0], [], []>} : vector<16x128xf32>, vector<128x128xf32>, vector<16x128xf32> -> vector<16x128xf32>
      %26 = arith.addf %24, %25 : vector<16x128xf32>
      %c0_19 = arith.constant 0 : index
      %c0_20 = arith.constant 0 : index
      %27 = vector.load %arg9[%c0_19, %c0_20] : memref<16x128xf32, #tpu.memory_space<vmem>>, vector<16x128xf32>
      tpu.vector_store %arg9[%c0_19, %c0_20], %26 {strides = array<i32>} : memref<16x128xf32, #tpu.memory_space<vmem>>, vector<16x128xf32>,
    } else {
    }
    %c0_i32_13 = arith.constant 0 : i32
    %17 = arith.cmpi eq, %arg2, %c0_i32_13 : i32
    %18 = arith.extui %17 : i1 to i32
    %c0_i32_14 = arith.constant 0 : i32
    %19 = arith.cmpi ne, %18, %c0_i32_14 : i32
    scf.if %19 {
      %c0_15 = arith.constant 0 : index
      %c0_16 = arith.constant 0 : index
      %20 = vector.load %arg9[%c0_15, %c0_16] : memref<16x128xf32, #tpu.memory_space<vmem>>, vector<16x128xf32>
      %c0_17 = arith.constant 0 : index
      %c0_18 = arith.constant 0 : index
      %21 = vector.load %arg6[%c0_17, %c0_18] : memref<128x128xf32, #tpu.memory_space<vmem>>, vector<128x128xf32>
      %cst_19 = arith.constant dense<0.000000e+00> : vector<16x128xf32>
      %22 = tpu.matmul %20, %21, %cst_19 {dimension_numbers = #tpu.dot_dimension_numbers<[1], [1], [0], [0], [0, 0, 1, 0], [], []>} : vector<16x128xf32>, vector<128x128xf32>, vector<16x128xf32> -> vector<16x128xf32>
      %c0_20 = arith.constant 0 : index
      %c0_21 = arith.constant 0 : index
      %23 = vector.load %arg8[%c0_20, %c0_21] : memref<16x128xf32, #tpu.memory_space<vmem>>, vector<16x128xf32>
      %24 = arith.addf %23, %22 : vector<16x128xf32>
      %c0_22 = arith.constant 0 : index
      %c0_23 = arith.constant 0 : index
      %25 = vector.load %arg7[%c0_22, %c0_23] : memref<16x128xf32, #tpu.memory_space<vmem>>, vector<16x128xf32>
      tpu.vector_store %arg7[%c0_22, %c0_23], %24 {strides = array<i32>} : memref<16x128xf32, #tpu.memory_space<vmem>>, vector<16x128xf32>,
    } else {
    }
    return
  }
  func.func @transform_0(%arg0: i32, %arg1: i32, %arg2: i32) -> (i32, i32) {
    %c0_i32 = arith.constant 0 : i32
    return %arg0, %arg2 : i32, i32
  }
  func.func @transform_1(%arg0: i32, %arg1: i32, %arg2: i32) -> (i32, i32) {
    %c0_i32 = arith.constant 0 : i32
    return %arg1, %arg2 : i32, i32
  }
  func.func @transform_2(%arg0: i32, %arg1: i32, %arg2: i32) -> (i32, i32) {
    %c0_i32 = arith.constant 0 : i32
    %c0_i32_0 = arith.constant 0 : i32
    %c0_i32_1 = arith.constant 0 : i32
    return %c0_i32, %c0_i32_0 : i32, i32
  }
  func.func @transform_3(%arg0: i32, %arg1: i32, %arg2: i32) -> (i32, i32) {
    %c0_i32 = arith.constant 0 : i32
    %c0_i32_0 = arith.constant 0 : i32
    return %arg1, %c0_i32 : i32, i32
  }
  func.func @transform_4(%arg0: i32, %arg1: i32, %arg2: i32) -> (i32, i32) {
    %c0_i32 = arith.constant 0 : i32
    return %arg0, %arg1 : i32, i32
  }
}

</mosaic_0001>

<llo_original>
// kernel: tpu_custom_call.1
$region0: #{tpu_custom_call.1}
  #allocation0 [shape = 'u32[]', space=smem, size = 0x4, offset = 0x4, fixed_abs, tag = 'smem constant byte address 0x4 - core index']
  #allocation1 [shape = 'u32[144,128]{1,0:T(1,128)}', space=vmem, size = 0x12000, scoped, tag = 'internal scratch']
  #allocation2 [shape = 'f32[16,128]{1,0:T(8,128)}', space=vmem, size = 0x2000, scoped, tag = 'scratch operand']
  #allocation3 [shape = 'f32[16,128]{1,0:T(8,128)}', space=vmem, size = 0x2000, scoped, tag = 'scratch operand']
  %s0 = inlined_call_operand.hbm [shape: f32[16,128], index: 0, kind: input, shape index: {}]
  %s1 = inlined_call_operand.hbm [shape: f32[128,128], index: 1, kind: input, shape index: {}]
  %s2 = inlined_call_operand.hbm [shape: f32[128,128], index: 2, kind: input, shape index: {}]
  %s3 = inlined_call_operand.hbm [shape: f32[128,128], index: 3, kind: input, shape index: {}]
  %s4 = inlined_call_operand.hbm [shape: f32[16,128], index: 4, kind: output, shape index: {}]
  %s5 = sld [smem:[#allocation0]]
  $region58: #{tpu_custom_call.1} parent=0
    _
  %s7 = ssub.s32 1, %s5
  %s8 = scalar_select 0, %s7, %s5
  $region1: #{tpu_custom_call.1} parent=0
    #allocation4 [shape = 'u8[8192]{0}', space=vmem, size = 0x2000, scoped, tag = 'input window, operand 0, single buffered']
    #allocation5 [shape = 's32[1]{0}', space=sflag, size = 0x4, scoped, tag = 'scoped memory for tpu_custom_call.1']
    #allocation6 [shape = 's32[1]{0}', space=sflag, size = 0x4, scoped, tag = 'scoped memory for tpu_custom_call.1']
    #allocation7 [shape = 'u8[65536]{0}', space=vmem, size = 0x10000, scoped, tag = 'input window, operand 1, single buffered']
    #allocation8 [shape = 's32[1]{0}', space=sflag, size = 0x4, scoped, tag = 'scoped memory for tpu_custom_call.1']
    #allocation9 [shape = 'u8[65536]{0}', space=vmem, size = 0x10000, scoped, tag = 'input window, operand 2, single buffered']
    #allocation10 [shape = 'u8[65536]{0}', space=vmem, size = 0x10000, scoped, tag = 'input window, operand 3, single buffered']
    #allocation11 [shape = 's32[1]{0}', space=sflag, size = 0x4, scoped, tag = 'scoped memory for tpu_custom_call.1']
    #allocation12 [shape = 'u8[8192]{0}', space=vmem, size = 0x2000, scoped, tag = 'output window, operand 0, single buffered']
    %9 = vsyncpa [#allocation5], 0
    %10 = vsyncpa [#allocation8], 0
    %11 = vsyncpa [#allocation11], 0
    %12 = vsyncpa [#allocation6], 0
    // Predicated region
    $region2: #{tpu_custom_call.1} parent=1 // pred_check
      _
    $region3: #{tpu_custom_call.1} parent=1 // pred_check_branch
      %14 = sbr.rel (0) target = $region5
    $region4: #{tpu_custom_call.1} parent=1 // pred_region
      %s16 = ssub.s32 256, 256
      %17 = vsyncadd [#allocation5], %s16
      %s18 = sshll.u32 [#allocation4], 4
      %s19 = int_to_ptr.vmem [resolvable:$true] %s18
      %24 = dma.hbm_to_vmem [thread:$0]  %s0, 256, %s19, [#allocation5], 128, 128, 8
    $region5: #{tpu_custom_call.1} parent=1 // pred_fallthru
      _
    // Predicated region
    $region6: #{tpu_custom_call.1} parent=1 // pred_check
      _
    $region7: #{tpu_custom_call.1} parent=1 // pred_check_branch
      %26 = sbr.rel (0) target = $region9
    $region8: #{tpu_custom_call.1} parent=1 // pred_region
      %s28 = ssub.s32 2048, 2048
      %29 = vsyncadd [#allocation8], %s28
      %s30 = sshll.u32 [#allocation7], 4
      %s31 = int_to_ptr.vmem [resolvable:$true] %s30
      %36 = dma.hbm_to_vmem [thread:$0]  %s1, 2048, %s31, [#allocation8], 128, 128, 8
    $region9: #{tpu_custom_call.1} parent=1 // pred_fallthru
      _
    // Predicated region
    $region10: #{tpu_custom_call.1} parent=1 // pred_check
      _
    $region11: #{tpu_custom_call.1} parent=1 // pred_check_branch
      %38 = sbr.rel (0) target = $region13
    $region12: #{tpu_custom_call.1} parent=1 // pred_region
      %s40 = ssub.s32 2048, 2048
      %41 = vsyncadd [#allocation8], %s40
      %s42 = sshll.u32 [#allocation9], 4
      %s43 = int_to_ptr.vmem [resolvable:$true] %s42
      %48 = dma.hbm_to_vmem [thread:$0]  %s2, 2048, %s43, [#allocation8], 128, 128, 8
    $region13: #{tpu_custom_call.1} parent=1 // pred_fallthru
      _
    // Predicated region
    $region14: #{tpu_custom_call.1} parent=1 // pred_check
      _
    $region15: #{tpu_custom_call.1} parent=1 // pred_check_branch
      %50 = sbr.rel (0) target = $region17
    $region16: #{tpu_custom_call.1} parent=1 // pred_region
      %s52 = ssub.s32 2048, 2048
      %53 = vsyncadd [#allocation11], %s52
      %s54 = sshll.u32 [#allocation10], 4
      %s55 = int_to_ptr.vmem [resolvable:$true] %s54
      %60 = dma.hbm_to_vmem [thread:$0]  %s3, 2048, %s55, [#allocation11], 128, 128, 8
    $region17: #{tpu_custom_call.1} parent=1 // pred_fallthru
      _
    // Predicated region
    $region18: #{tpu_custom_call.1} parent=1 // pred_check
      _
    $region19: #{tpu_custom_call.1} parent=1 // pred_check_branch
      %62 = sbr.rel (0) target = $region21
    $region20: #{tpu_custom_call.1} parent=1 // pred_region
      %63 = dma.done [#allocation5], 256
    $region21: #{tpu_custom_call.1} parent=1 // pred_fallthru
      _
    // Predicated region
    $region22: #{tpu_custom_call.1} parent=1 // pred_check
      _
    $region23: #{tpu_custom_call.1} parent=1 // pred_check_branch
      %65 = sbr.rel (0) target = $region25
    $region24: #{tpu_custom_call.1} parent=1 // pred_region
      %66 = dma.done [#allocation8], 2048
    $region25: #{tpu_custom_call.1} parent=1 // pred_fallthru
      _
    // Predicated region
    $region26: #{tpu_custom_call.1} parent=1 // pred_check
      _
    $region27: #{tpu_custom_call.1} parent=1 // pred_check_branch
      %68 = sbr.rel (0) target = $region29
    $region28: #{tpu_custom_call.1} parent=1 // pred_region
      %69 = dma.done [#allocation8], 2048
    $region29: #{tpu_custom_call.1} parent=1 // pred_fallthru
      _
    // Predicated region
    $region30: #{tpu_custom_call.1} parent=1 // pred_check
      _
    $region31: #{tpu_custom_call.1} parent=1 // pred_check_branch
      %71 = sbr.rel (0) target = $region33
    $region32: #{tpu_custom_call.1} parent=1 // pred_region
      %72 = dma.done [#allocation11], 2048
    $region33: #{tpu_custom_call.1} parent=1 // pred_fallthru
      _
    %p73 = scmp.eq.s32.totalorder 0, 0
    // Predicated region
    $region34: #{tpu_custom_call.1} parent=1 // pred_check
      %p74 = pneg %p73
    $region35: #{tpu_custom_call.1} parent=1 // pred_check_branch
      %76 = sbr.rel (%p74) target = $region37
    $region36: #{tpu_custom_call.1} parent=1 // pred_region
      %77 = vst [vmem:[#allocation2] sm:$0xff] 0.0
      %78 = vst [vmem:[#allocation2 + $0x8] sm:$0xff] 0.0
    $region37: #{tpu_custom_call.1} parent=1 // pred_fallthru
      _
    %p79 = scmp.eq.s32.totalorder 0, 0
    %p80 = pnand %p79, %p73
    %p81 = pneg %p80
    // Predicated region
    $region38: #{tpu_custom_call.1} parent=1 // pred_check
      _
    $region39: #{tpu_custom_call.1} parent=1 // pred_check_branch
      %83 = sbr.rel (%p80) target = $region41
    $region40: #{tpu_custom_call.1} parent=1 // pred_region
      %84 = vst [vmem:[#allocation3] sm:$0xff] 0.0
      %85 = vst [vmem:[#allocation3 + $0x8] sm:$0xff] 0.0
    $region41: #{tpu_custom_call.1} parent=1 // pred_fallthru
      _
    %v86 = vld [vmem:[#allocation4] sm:$0xff]
    %v87 = vld [vmem:[#allocation4 + $0x8] sm:$0xff]
    %v88 = vld [vmem:[#allocation2] sm:$0xff]
    %v89 = vld [vmem:[#allocation2 + $0x8] sm:$0xff]
    %v90 = vld [vmem:[#allocation7] sm:$0xff]
    %v91 = vld [vmem:[#allocation7 + $0x8] sm:$0xff]
    %v92 = vld [vmem:[#allocation7 + $0x10] sm:$0xff]
    %v93 = vld [vmem:[#allocation7 + $0x18] sm:$0xff]
    %v94 = vld [vmem:[#allocation7 + $0x20] sm:$0xff]
    %v95 = vld [vmem:[#allocation7 + $0x28] sm:$0xff]
    %v96 = vld [vmem:[#allocation7 + $0x30] sm:$0xff]
    %v97 = vld [vmem:[#allocation7 + $0x38] sm:$0xff]
    %v98 = vld [vmem:[#allocation7 + $0x40] sm:$0xff]
    %v99 = vld [vmem:[#allocation7 + $0x48] sm:$0xff]
    %v100 = vld [vmem:[#allocation7 + $0x50] sm:$0xff]
    %v101 = vld [vmem:[#allocation7 + $0x58] sm:$0xff]
    %v102 = vld [vmem:[#allocation7 + $0x60] sm:$0xff]
    %v103 = vld [vmem:[#allocation7 + $0x68] sm:$0xff]
    %v104 = vld [vmem:[#allocation7 + $0x70] sm:$0xff]
    %v105 = vld [vmem:[#allocation7 + $0x78] sm:$0xff]
    %106 = vmatprep.subr.mxu0 0.0
    %107 = vmatpush1.xpose.msra.mxu0 %v105
    %108 = vmatprep.subr.mxu0 0.0
    %109 = vmatpush1.xpose.msra.mxu0 %v104
    %110 = vmatprep.subr.mxu0 0.0
    %111 = vmatpush1.xpose.msra.mxu0 %v103
    %112 = vmatprep.subr.mxu0 0.0
    %113 = vmatpush1.xpose.msra.mxu0 %v102
    %114 = vmatprep.subr.mxu0 0.0
    %115 = vmatpush1.xpose.msra.mxu0 %v101
    %116 = vmatprep.subr.mxu0 0.0
    %117 = vmatpush1.xpose.msra.mxu0 %v100
    %118 = vmatprep.subr.mxu0 0.0
    %119 = vmatpush1.xpose.msra.mxu0 %v99
    %120 = vmatprep.subr.mxu0 0.0
    %121 = vmatpush1.xpose.msra.mxu0 %v98
    %122 = vmatprep.subr.mxu0 0.0
    %123 = vmatpush1.xpose.msra.mxu0 %v97
    %124 = vmatprep.subr.mxu0 0.0
    %125 = vmatpush1.xpose.msra.mxu0 %v96
    %126 = vmatprep.subr.mxu0 0.0
    %127 = vmatpush1.xpose.msra.mxu0 %v95
    %128 = vmatprep.subr.mxu0 0.0
    %129 = vmatpush1.xpose.msra.mxu0 %v94
    %130 = vmatprep.subr.mxu0 0.0
    %131 = vmatpush1.xpose.msra.mxu0 %v93
    %132 = vmatprep.subr.mxu0 0.0
    %133 = vmatpush1.xpose.msra.mxu0 %v92
    %134 = vmatprep.subr.mxu0 0.0
    %135 = vmatpush1.xpose.msra.mxu0 %v91
    %136 = vmatprep.subr.mxu0 0.0
    %137 = vmatpush1.xpose.msra.mxu0 %v90
    %138 = vmatprep.subr.mxu0 0.0
    %139 = vmatpush2.xpose.msra.mxu0 0.0
    %140 = vmatprep.subr.mxu0 0.0
    %141 = vmatpush2.xpose.msra.mxu0 0.0
    %142 = vmatprep.subr.mxu0 0.0
    %143 = vmatpush2.xpose.msra.mxu0 0.0
    %144 = vmatprep.subr.mxu0 0.0
    %145 = vmatpush2.xpose.msra.mxu0 0.0
    %146 = vmatprep.subr.mxu0 0.0
    %147 = vmatpush2.xpose.msra.mxu0 0.0
    %148 = vmatprep.subr.mxu0 0.0
    %149 = vmatpush2.xpose.msra.mxu0 0.0
    %150 = vmatprep.subr.mxu0 0.0
    %151 = vmatpush2.xpose.msra.mxu0 0.0
    %152 = vmatprep.subr.mxu0 0.0
    %153 = vmatpush2.xpose.msra.mxu0 0.0
    %154 = vmatprep.subr.mxu0 0.0
    %155 = vmatpush2.xpose.msra.mxu0 0.0
    %156 = vmatprep.subr.mxu0 0.0
    %157 = vmatpush2.xpose.msra.mxu0 0.0
    %158 = vmatprep.subr.mxu0 0.0
    %159 = vmatpush2.xpose.msra.mxu0 0.0
    %160 = vmatprep.subr.mxu0 0.0
    %161 = vmatpush2.xpose.msra.mxu0 0.0
    %162 = vmatprep.subr.mxu0 0.0
    %163 = vmatpush2.xpose.msra.mxu0 0.0
    %164 = vmatprep.subr.mxu0 0.0
    %165 = vmatpush2.xpose.msra.mxu0 0.0
    %166 = vmatprep.subr.mxu0 0.0
    %167 = vmatpush2.xpose.msra.mxu0 0.0
    %168 = vmatprep.subr.mxu0 0.0
    %169 = vmatpush2.xpose.msra.mxu0 0.0
    %170 = vmatprep.mubr.f32.mxu0 0.0
    %171 = vmatmul.mubr.f32.gmra.mxu0 %v86
    %v172 = vpop.f32.mrf.mxu0
    %v173 = vadd.f32 0.0, %v172
    %v174 = vpop.f32.mrf.mxu0
    %175 = vmatprep.mubr.f32.mxu0 0.0
    %176 = vmatmul.mubr.f32.gmra.mxu0 %v87
    %v177 = vpop.f32.mrf.mxu0
    %v178 = vadd.f32 0.0, %v177
    %v179 = vpop.f32.mrf.mxu0
    %180 = vdwg.mxu0
    %v181 = vadd.f32 %v88, %v173
    %v182 = vadd.f32 %v89, %v178
    %183 = vst [vmem:[#allocation2] sm:$0xff] %v181
    %184 = vst [vmem:[#allocation2 + $0x8] sm:$0xff] %v182
    // Predicated region
    $region42: #{tpu_custom_call.1} parent=1 // pred_check
      %p185 = pneg %p79
    $region43: #{tpu_custom_call.1} parent=1 // pred_check_branch
      %187 = sbr.rel (%p185) target = $region45
    $region44: #{tpu_custom_call.1} parent=1 // pred_region
      %s188 = smul.u32 0, 128
      %s189 = sshra.s32 %s188, 7
      %s190 = sand.u32 %s188, 127
      %s191 = scalar_lea.vmem [#allocation9], %s189
      %v192 = vld [vmem:[%s191] sm:$0xff]
      %v193 = vld [vmem:[%s191 + $0x8] sm:$0xff]
      %v194 = vld [vmem:[%s191 + $0x10] sm:$0xff]
      %v195 = vld [vmem:[%s191 + $0x18] sm:$0xff]
      %v196 = vld [vmem:[%s191 + $0x20] sm:$0xff]
      %v197 = vld [vmem:[%s191 + $0x28] sm:$0xff]
      %v198 = vld [vmem:[%s191 + $0x30] sm:$0xff]
      %v199 = vld [vmem:[%s191 + $0x38] sm:$0xff]
      %v200 = vld [vmem:[%s191 + $0x40] sm:$0xff]
      %v201 = vld [vmem:[%s191 + $0x48] sm:$0xff]
      %v202 = vld [vmem:[%s191 + $0x50] sm:$0xff]
      %v203 = vld [vmem:[%s191 + $0x58] sm:$0xff]
      %v204 = vld [vmem:[%s191 + $0x60] sm:$0xff]
      %v205 = vld [vmem:[%s191 + $0x68] sm:$0xff]
      %v206 = vld [vmem:[%s191 + $0x70] sm:$0xff]
      %v207 = vld [vmem:[%s191 + $0x78] sm:$0xff]
      %v208 = vld [vmem:[#allocation3] sm:$0xff]
      %v209 = vld [vmem:[#allocation3 + $0x8] sm:$0xff]
      %210 = vmatprep.subr.mxu0 0.0
      %211 = vmatpush1.xpose.msra.mxu0 %v207
      %212 = vmatprep.subr.mxu0 0.0
      %213 = vmatpush1.xpose.msra.mxu0 %v206
      %214 = vmatprep.subr.mxu0 0.0
      %215 = vmatpush1.xpose.msra.mxu0 %v205
      %216 = vmatprep.subr.mxu0 0.0
      %217 = vmatpush1.xpose.msra.mxu0 %v204
      %218 = vmatprep.subr.mxu0 0.0
      %219 = vmatpush1.xpose.msra.mxu0 %v203
      %220 = vmatprep.subr.mxu0 0.0
      %221 = vmatpush1.xpose.msra.mxu0 %v202
      %222 = vmatprep.subr.mxu0 0.0
      %223 = vmatpush1.xpose.msra.mxu0 %v201
      %224 = vmatprep.subr.mxu0 0.0
      %225 = vmatpush1.xpose.msra.mxu0 %v200
      %226 = vmatprep.subr.mxu0 0.0
      %227 = vmatpush1.xpose.msra.mxu0 %v199
      %228 = vmatprep.subr.mxu0 0.0
      %229 = vmatpush1.xpose.msra.mxu0 %v198
      %230 = vmatprep.subr.mxu0 0.0
      %231 = vmatpush1.xpose.msra.mxu0 %v197
      %232 = vmatprep.subr.mxu0 0.0
      %233 = vmatpush1.xpose.msra.mxu0 %v196
      %234 = vmatprep.subr.mxu0 0.0
      %235 = vmatpush1.xpose.msra.mxu0 %v195
      %236 = vmatprep.subr.mxu0 0.0
      %237 = vmatpush1.xpose.msra.mxu0 %v194
      %238 = vmatprep.subr.mxu0 0.0
      %239 = vmatpush1.xpose.msra.mxu0 %v193
      %240 = vmatprep.subr.mxu0 0.0
      %241 = vmatpush1.xpose.msra.mxu0 %v192
      %242 = vmatprep.subr.mxu0 0.0
      %243 = vmatpush2.xpose.msra.mxu0 0.0
      %244 = vmatprep.subr.mxu0 0.0
      %245 = vmatpush2.xpose.msra.mxu0 0.0
      %246 = vmatprep.subr.mxu0 0.0
      %247 = vmatpush2.xpose.msra.mxu0 0.0
      %248 = vmatprep.subr.mxu0 0.0
      %249 = vmatpush2.xpose.msra.mxu0 0.0
      %250 = vmatprep.subr.mxu0 0.0
      %251 = vmatpush2.xpose.msra.mxu0 0.0
      %252 = vmatprep.subr.mxu0 0.0
      %253 = vmatpush2.xpose.msra.mxu0 0.0
      %254 = vmatprep.subr.mxu0 0.0
      %255 = vmatpush2.xpose.msra.mxu0 0.0
      %256 = vmatprep.subr.mxu0 0.0
      %257 = vmatpush2.xpose.msra.mxu0 0.0
      %258 = vmatprep.subr.mxu0 0.0
      %259 = vmatpush2.xpose.msra.mxu0 0.0
      %260 = vmatprep.subr.mxu0 0.0
      %261 = vmatpush2.xpose.msra.mxu0 0.0
      %262 = vmatprep.subr.mxu0 0.0
      %263 = vmatpush2.xpose.msra.mxu0 0.0
      %264 = vmatprep.subr.mxu0 0.0
      %265 = vmatpush2.xpose.msra.mxu0 0.0
      %266 = vmatprep.subr.mxu0 0.0
      %267 = vmatpush2.xpose.msra.mxu0 0.0
      %268 = vmatprep.subr.mxu0 0.0
      %269 = vmatpush2.xpose.msra.mxu0 0.0
      %270 = vmatprep.subr.mxu0 0.0
      %271 = vmatpush2.xpose.msra.mxu0 0.0
      %272 = vmatprep.subr.mxu0 0.0
      %273 = vmatpush2.xpose.msra.mxu0 0.0
      %274 = vmatprep.mubr.f32.mxu0 0.0
      %275 = vmatmul.mubr.f32.gmra.mxu0 %v86
      %v276 = vpop.f32.mrf.mxu0
      %v277 = vadd.f32 0.0, %v276
      %v278 = vpop.f32.mrf.mxu0
      %279 = vmatprep.mubr.f32.mxu0 0.0
      %280 = vmatmul.mubr.f32.gmra.mxu0 %v87
      %v281 = vpop.f32.mrf.mxu0
      %v282 = vadd.f32 0.0, %v281
      %v283 = vpop.f32.mrf.mxu0
      %284 = vdwg.mxu0
      %v285 = vadd.f32 %v208, %v277
      %v286 = vadd.f32 %v209, %v282
      %287 = vst [vmem:[#allocation3] sm:$0xff] %v285
      %288 = vst [vmem:[#allocation3 + $0x8] sm:$0xff] %v286
    $region45: #{tpu_custom_call.1} parent=1 // pred_fallthru
      _
    // Predicated region
    $region46: #{tpu_custom_call.1} parent=1 // pred_check
      %p289 = pneg %p73
    $region47: #{tpu_custom_call.1} parent=1 // pred_check_branch
      %291 = sbr.rel (%p289) target = $region49
    $region48: #{tpu_custom_call.1} parent=1 // pred_region
      %v292 = vld [vmem:[#allocation3] sm:$0xff]
      %v293 = vld [vmem:[#allocation3 + $0x8] sm:$0xff]
      %v294 = vld [vmem:[#allocation10] sm:$0xff]
      %v295 = vld [vmem:[#allocation10 + $0x8] sm:$0xff]
      %v296 = vld [vmem:[#allocation10 + $0x10] sm:$0xff]
      %v297 = vld [vmem:[#allocation10 + $0x18] sm:$0xff]
      %v298 = vld [vmem:[#allocation10 + $0x20] sm:$0xff]
      %v299 = vld [vmem:[#allocation10 + $0x28] sm:$0xff]
      %v300 = vld [vmem:[#allocation10 + $0x30] sm:$0xff]
      %v301 = vld [vmem:[#allocation10 + $0x38] sm:$0xff]
      %v302 = vld [vmem:[#allocation10 + $0x40] sm:$0xff]
      %v303 = vld [vmem:[#allocation10 + $0x48] sm:$0xff]
      %v304 = vld [vmem:[#allocation10 + $0x50] sm:$0xff]
      %v305 = vld [vmem:[#allocation10 + $0x58] sm:$0xff]
      %v306 = vld [vmem:[#allocation10 + $0x60] sm:$0xff]
      %v307 = vld [vmem:[#allocation10 + $0x68] sm:$0xff]
      %v308 = vld [vmem:[#allocation10 + $0x70] sm:$0xff]
      %v309 = vld [vmem:[#allocation10 + $0x78] sm:$0xff]
      %310 = vmatprep.subr.mxu0 0.0
      %311 = vmatpush1.xpose.msra.mxu0 %v309
      %312 = vmatprep.subr.mxu0 0.0
      %313 = vmatpush1.xpose.msra.mxu0 %v308
      %314 = vmatprep.subr.mxu0 0.0
      %315 = vmatpush1.xpose.msra.mxu0 %v307
      %316 = vmatprep.subr.mxu0 0.0
      %317 = vmatpush1.xpose.msra.mxu0 %v306
      %318 = vmatprep.subr.mxu0 0.0
      %319 = vmatpush1.xpose.msra.mxu0 %v305
      %320 = vmatprep.subr.mxu0 0.0
      %321 = vmatpush1.xpose.msra.mxu0 %v304
      %322 = vmatprep.subr.mxu0 0.0
      %323 = vmatpush1.xpose.msra.mxu0 %v303
      %324 = vmatprep.subr.mxu0 0.0
      %325 = vmatpush1.xpose.msra.mxu0 %v302
      %326 = vmatprep.subr.mxu0 0.0
      %327 = vmatpush1.xpose.msra.mxu0 %v301
      %328 = vmatprep.subr.mxu0 0.0
      %329 = vmatpush1.xpose.msra.mxu0 %v300
      %330 = vmatprep.subr.mxu0 0.0
      %331 = vmatpush1.xpose.msra.mxu0 %v299
      %332 = vmatprep.subr.mxu0 0.0
      %333 = vmatpush1.xpose.msra.mxu0 %v298
      %334 = vmatprep.subr.mxu0 0.0
      %335 = vmatpush1.xpose.msra.mxu0 %v297
      %336 = vmatprep.subr.mxu0 0.0
      %337 = vmatpush1.xpose.msra.mxu0 %v296
      %338 = vmatprep.subr.mxu0 0.0
      %339 = vmatpush1.xpose.msra.mxu0 %v295
      %340 = vmatprep.subr.mxu0 0.0
      %341 = vmatpush1.xpose.msra.mxu0 %v294
      %342 = vmatprep.subr.mxu0 0.0
      %343 = vmatpush2.xpose.msra.mxu0 0.0
      %344 = vmatprep.subr.mxu0 0.0
      %345 = vmatpush2.xpose.msra.mxu0 0.0
      %346 = vmatprep.subr.mxu0 0.0
      %347 = vmatpush2.xpose.msra.mxu0 0.0
      %348 = vmatprep.subr.mxu0 0.0
      %349 = vmatpush2.xpose.msra.mxu0 0.0
      %350 = vmatprep.subr.mxu0 0.0
      %351 = vmatpush2.xpose.msra.mxu0 0.0
      %352 = vmatprep.subr.mxu0 0.0
      %353 = vmatpush2.xpose.msra.mxu0 0.0
      %354 = vmatprep.subr.mxu0 0.0
      %355 = vmatpush2.xpose.msra.mxu0 0.0
      %356 = vmatprep.subr.mxu0 0.0
      %357 = vmatpush2.xpose.msra.mxu0 0.0
      %358 = vmatprep.subr.mxu0 0.0
      %359 = vmatpush2.xpose.msra.mxu0 0.0
      %360 = vmatprep.subr.mxu0 0.0
      %361 = vmatpush2.xpose.msra.mxu0 0.0
      %362 = vmatprep.subr.mxu0 0.0
      %363 = vmatpush2.xpose.msra.mxu0 0.0
      %364 = vmatprep.subr.mxu0 0.0
      %365 = vmatpush2.xpose.msra.mxu0 0.0
      %366 = vmatprep.subr.mxu0 0.0
      %367 = vmatpush2.xpose.msra.mxu0 0.0
      %368 = vmatprep.subr.mxu0 0.0
      %369 = vmatpush2.xpose.msra.mxu0 0.0
      %370 = vmatprep.subr.mxu0 0.0
      %371 = vmatpush2.xpose.msra.mxu0 0.0
      %372 = vmatprep.subr.mxu0 0.0
      %373 = vmatpush2.xpose.msra.mxu0 0.0
      %374 = vmatprep.mubr.f32.mxu0 0.0
      %375 = vmatmul.mubr.f32.gmra.mxu0 %v292
      %v376 = vpop.f32.mrf.mxu0
      %v377 = vadd.f32 0.0, %v376
      %v378 = vpop.f32.mrf.mxu0
      %379 = vmatprep.mubr.f32.mxu0 0.0
      %380 = vmatmul.mubr.f32.gmra.mxu0 %v293
      %v381 = vpop.f32.mrf.mxu0
      %v382 = vadd.f32 0.0, %v381
      %v383 = vpop.f32.mrf.mxu0
      %384 = vdwg.mxu0
      %v385 = vld [vmem:[#allocation2] sm:$0xff]
      %v386 = vld [vmem:[#allocation2 + $0x8] sm:$0xff]
      %v387 = vadd.f32 %v385, %v377
      %v388 = vadd.f32 %v386, %v382
      %389 = vst [vmem:[#allocation12] sm:$0xff] %v387
      %390 = vst [vmem:[#allocation12 + $0x8] sm:$0xff] %v388
    $region49: #{tpu_custom_call.1} parent=1 // pred_fallthru
      _
    // Predicated region
    $region50: #{tpu_custom_call.1} parent=1 // pred_check
      _
    $region51: #{tpu_custom_call.1} parent=1 // pred_check_branch
      %392 = sbr.rel (0) target = $region53
    $region52: #{tpu_custom_call.1} parent=1 // pred_region
      %s394 = ssub.s32 256, 256
      %395 = vsyncadd [#allocation6], %s394
      %s396 = sshll.u32 [#allocation12], 4
      %s397 = int_to_ptr.vmem [resolvable:$true] %s396
      %402 = dma.vmem_to_hbm [thread:$0]  %s397, 256, %s4, [#allocation6], 128, 128, 8
    $region53: #{tpu_custom_call.1} parent=1 // pred_fallthru
      _
    // Predicated region
    $region54: #{tpu_custom_call.1} parent=1 // pred_check
      _
    $region55: #{tpu_custom_call.1} parent=1 // pred_check_branch
      %404 = sbr.rel (0) target = $region57
    $region56: #{tpu_custom_call.1} parent=1 // pred_region
      %405 = dma.done [#allocation6], 256
    $region57: #{tpu_custom_call.1} parent=1 // pred_fallthru
      _
    %406 = vsyncpa [#allocation5], 1
    %407 = vsyncpa [#allocation8], 1
    %408 = vsyncpa [#allocation11], 1
    %409 = vsyncpa [#allocation6], 1

</llo_original>
